<compile_context>
chip_gen: v5e
topology: v5e:2x2
jax: 0.10.0
libtpu: 0.0.40
codegen_flags: <defaults>
</compile_context>

<pallas_src>
import jax
import jax.numpy as jnp
from jax.experimental import pallas as pl
from jax.experimental.pallas import tpu as pltpu


def _round_up(x, m):
    return ((x + m - 1) // m) * m


# ----------------------------------------------------------------------------
# Fused kernel factory: all conv+GLU layers for one batch element.
# ----------------------------------------------------------------------------
def _make_fused_kernel(layer_cfgs, t_in):
    n_layers = len(layer_cfgs)

    def stage(dst_ref, cfg, value, n_rows):
        """Write one layer's input rows into its padded VMEM scratch.

        The whole scratch is zeroed first (cheap, aligned VMEM stores) so the
        conv taps can read a contiguous zero-padded stream with no edge cases.
        """
        lead = cfg["lead"]
        if cfg["pad"] > 0:
            dst_ref[...] = jnp.zeros_like(dst_ref)
        dst_ref[pl.ds(lead, n_rows), :] = value.astype(dst_ref.dtype)

    def conv_glu(src_ref, cfg, wv_ref, wg_ref, bv_ref, bg_ref):
        k, pad, lead = cfg["k"], cfg["pad"], cfg["lead"]
        t_out, c_half = cfg["t_out"], cfg["c_half"]
        base = lead - pad                 # origin of the zero-padded stream
        acc_v = jnp.zeros((t_out, c_half), jnp.float32)
        acc_g = jnp.zeros((t_out, c_half), jnp.float32)
        for j in range(k):                # static unroll over conv taps
            # stride-2 tap gather straight from VMEM (static start & stride)
            xj = src_ref[pl.ds(base + j, t_out, stride=2), :]
            # gate dots issued alongside value dots; the sigmoid (EUP) below
            # overlaps the remaining MXU work.
            acc_g = acc_g + jnp.dot(xj, wg_ref[j],
                                    preferred_element_type=jnp.float32)
            acc_v = acc_v + jnp.dot(xj, wv_ref[j],
                                    preferred_element_type=jnp.float32)
        gate = jax.nn.sigmoid(acc_g + bg_ref[...])
        return (acc_v + bv_ref[...]) * gate          # GLU, f32 epilogue

    def kernel(*refs):
        x_ref = refs[0]
        params = refs[1:1 + 4 * n_layers]
        o_ref = refs[1 + 4 * n_layers]
        scratches = refs[2 + 4 * n_layers:]

        # Stage the raw input (one batch element) with its conv zero-padding.
        stage(scratches[0], layer_cfgs[0], x_ref[...], t_in)

        for i in range(n_layers):
            cfg = layer_cfgs[i]
            wv, wg, bv, bg = params[4 * i:4 * i + 4]
            h = conv_glu(scratches[i], cfg, wv, wg, bv, bg)
            if i + 1 < n_layers:
                # Intermediate activation stays resident in VMEM.
                stage(scratches[i + 1], layer_cfgs[i + 1], h, cfg["t_out"])
            else:
                o_ref[...] = h.astype(o_ref.dtype)

    return kernel


# ----------------------------------------------------------------------------
# Module-level forward (matches Conv1dSubsampler.forward semantics).
# ----------------------------------------------------------------------------
def conv1d_subsampler_forward(src_tokens, src_lengths, params,
                              compute_dtype=jnp.bfloat16):
    """src_tokens: (B, T, C_in); src_lengths: (B,) int.
    params: list of (weight (C_out, C_in, K), bias (C_out,)) per conv layer.
    Returns (x, out_lengths) with x of shape (T_out, B, out_channels)."""
    b_sz, t_in, c_in0 = (int(d) for d in src_tokens.shape)
    n_layers = len(params)
    out_dtype = src_tokens.dtype
    cdt_size = jnp.dtype(compute_dtype).itemsize

    layer_cfgs, flat_params, scratch_shapes = [], [], []
    in_specs = [pl.BlockSpec((pl.Squeezed(), t_in, c_in0), lambda b: (b, 0, 0))]
    vmem_est = 2 * t_in * c_in0 * jnp.dtype(src_tokens.dtype).itemsize

    rows_in, c_in = t_in, c_in0
    for (w, bias) in params:
        c_out, c_in_w, k = (int(d) for d in w.shape)
        assert c_in_w == c_in and c_out % 2 == 0
        pad = k // 2
        t_out = (rows_in + 2 * pad - k) // 2 + 1
        assert t_out >= 1
        c_half = c_out // 2
        lead = _round_up(pad, 8)                       # aligned data origin
        rows = _round_up(lead + rows_in + pad, 8)      # padded scratch length

        layer_cfgs.append(dict(k=k, pad=pad, lead=lead, t_out=t_out,
                               c_in=c_in, c_half=c_half))
        scratch_shapes.append(pltpu.VMEM((rows, c_in), compute_dtype))

        # PyTorch (C_out, C_in, K) -> (K, C_in, C_out); split GLU value/gate.
        wt = jnp.transpose(w, (2, 1, 0))
        wv = wt[..., :c_half].astype(compute_dtype)
        wg = wt[..., c_half:].astype(compute_dtype)
        bv = bias[:c_half].reshape(1, c_half).astype(jnp.float32)
        bg = bias[c_half:].reshape(1, c_half).astype(jnp.float32)
        flat_params += [wv, wg, bv, bg]
        in_specs += [
            pl.BlockSpec((k, c_in, c_half), lambda b: (0, 0, 0)),   # resident
            pl.BlockSpec((k, c_in, c_half), lambda b: (0, 0, 0)),
            pl.BlockSpec((1, c_half), lambda b: (0, 0)),
            pl.BlockSpec((1, c_half), lambda b: (0, 0)),
        ]

        vmem_est += rows * c_in * cdt_size                    # padded scratch
        vmem_est += 2 * (2 * k * c_in * c_half * cdt_size)    # weights (dbl-buf)
        vmem_est += 2 * (2 * c_half * 4)                      # biases
        vmem_est += 3 * t_out * c_half * 4                    # f32 temporaries
        rows_in, c_in = t_out, c_half

    t_final, c_final = rows_in, c_in
    vmem_est += 2 * t_final * c_final * jnp.dtype(out_dtype).itemsize
    vmem_limit = int(min(max(vmem_est + (2 << 20), 16 << 20), 100 << 20))

    kernel = _make_fused_kernel(layer_cfgs, t_in)

    y = pl.pallas_call(
        kernel,
        out_shape=jax.ShapeDtypeStruct((b_sz, t_final, c_final), out_dtype),
        grid=(b_sz,),
        in_specs=in_specs,
        out_specs=pl.BlockSpec((pl.Squeezed(), t_final, c_final),
                               lambda b: (b, 0, 0)),
        scratch_shapes=scratch_shapes,
        compiler_params=pltpu.CompilerParams(
            dimension_semantics=("parallel",),
            vmem_limit_bytes=vmem_limit,
        ),
    )(src_tokens, *flat_params)

    # (B, T_out, C) -> (T_out, B, C)   [PyTorch: transpose(1,2).transpose(0,1)]
    # TODO(synk): fold this transpose into the last out_spec once a
    # second-minor block size of 1 is validated on all TPU generations.
    x = jnp.transpose(y, (1, 0, 2))

    out_lens = src_lengths
    for _ in range(n_layers):
        out_lens = jnp.floor(
            (out_lens.astype(jnp.float32) - 1.0) / 2.0 + 1.0
        ).astype(src_lengths.dtype)
    return x, out_lens


def init_params(key, in_channels, mid_channels, out_channels, kernel_sizes=(3, 3)):
    """Deterministic Conv1d parameter init (PyTorch-style uniform bound)."""
    n_layers = len(kernel_sizes)
    params = []
    for i, k in enumerate(kernel_sizes):
        c_in = in_channels if i == 0 else mid_channels // 2
        c_out = mid_channels if i < n_layers - 1 else out_channels * 2
        key, kw, kb = jax.random.split(key, 3)
        bound = 1.0 / jnp.sqrt(c_in * k)
        w = jax.random.uniform(kw, (c_out, c_in, k), jnp.float32, -bound, bound)
        b = jax.random.uniform(kb, (c_out,), jnp.float32, -bound, bound)
        params.append((w, b))
    return params


# ----------------------------------------------------------------------------
# Pure-JAX reference (lax conv) for correctness checks.
# ----------------------------------------------------------------------------
def reference_forward(src_tokens, src_lengths, params):
    x = jnp.transpose(src_tokens, (0, 2, 1))          # (B, C, T)
    for (w, b) in params:
        k = w.shape[-1]
        y = jax.lax.conv_general_dilated(
            x, w, window_strides=(2,), padding=[(k // 2, k // 2)],
            dimension_numbers=("NCH", "OIH", "NCH"),
        ) + b[None, :, None]
        half = y.shape[1] // 2
        x = y[:, :half, :] * jax.nn.sigmoid(y[:, half:, :])
    x = jnp.transpose(x, (2, 0, 1))                   # (T_out, B, C)
    out_lens = src_lengths
    for _ in range(len(params)):
        out_lens = jnp.floor(
            (out_lens.astype(jnp.float32) - 1.0) / 2.0 + 1.0
        ).astype(src_lengths.dtype)
    return x, out_lens


if __name__ == "__main__":
    B, T, C_IN = 2, 16, 4
    MID, OUT = 8, 8

    key = jax.random.PRNGKey(0)
    key, k_x = jax.random.split(key)
    src_tokens = jax.random.normal(k_x, (B, T, C_IN), jnp.float32)
    src_lengths = jnp.array([16, 12], dtype=jnp.int32)

    params = init_params(jax.random.PRNGKey(0), C_IN, MID, OUT, kernel_sizes=(3, 3))

    x_ref, lens_ref = reference_forward(src_tokens, src_lengths, params)

    # f32 compute path: strict check of the fused-kernel math.
    x32, lens32 = conv1d_subsampler_forward(
        src_tokens, src_lengths, params, compute_dtype=jnp.float32)
    x32 = jax.block_until_ready(x32)
    lens32 = jax.block_until_ready(lens32)
    assert x32.shape == x_ref.shape, (x32.shape, x_ref.shape)
    assert jnp.allclose(x32, x_ref, atol=1e-5, rtol=1e-5)
    assert jnp.array_equal(lens32, lens_ref)

    # bf16 compute path (performance default): looser tolerance.
    xbf, lensbf = conv1d_subsampler_forward(src_tokens, src_lengths, params)
    xbf = jax.block_until_ready(xbf)
    assert xbf.shape == x_ref.shape
    assert jnp.allclose(xbf.astype(jnp.float32), x_ref, atol=8e-2, rtol=8e-2)
    assert jnp.array_equal(lensbf, lens_ref)

    print("KERNEL_OK")
</pallas_src>

<mosaic_0001>
module attributes {stable_mosaic.version = 11 : i64} {
  func.func @kernel(%arg0: i32, %arg1: memref<1x16x4xf32, #tpu.memory_space<vmem>>, %arg2: memref<3x4x4xf32, #tpu.memory_space<vmem>>, %arg3: memref<3x4x4xf32, #tpu.memory_space<vmem>>, %arg4: memref<1x4xf32, #tpu.memory_space<vmem>>, %arg5: memref<1x4xf32, #tpu.memory_space<vmem>>, %arg6: memref<3x4x8xf32, #tpu.memory_space<vmem>>, %arg7: memref<3x4x8xf32, #tpu.memory_space<vmem>>, %arg8: memref<1x8xf32, #tpu.memory_space<vmem>>, %arg9: memref<1x8xf32, #tpu.memory_space<vmem>>, %arg10: memref<1x4x8xf32, #tpu.memory_space<vmem>>, %arg11: memref<32x4xf32, #tpu.memory_space<vmem>>, %arg12: memref<24x4xf32, #tpu.memory_space<vmem>>) attributes {dimension_semantics = [#tpu.dimension_semantics<parallel>], iteration_bounds = array<i64: 2>, scalar_prefetch = 0 : i64, scratch_operands = 2 : i64, tpu.core_type = #tpu.core_type<tc>, window_params = [{transform_indices = @transform_0, window_bounds = array<i64: 1, 16, 4>}, {pipeline_mode = #tpu.pipeline_mode<synchronous>, transform_indices = @transform_1, window_bounds = array<i64: 3, 4, 4>}, {pipeline_mode = #tpu.pipeline_mode<synchronous>, transform_indices = @transform_2, window_bounds = array<i64: 3, 4, 4>}, {pipeline_mode = #tpu.pipeline_mode<synchronous>, transform_indices = @transform_3, window_bounds = array<i64: 1, 4>}, {pipeline_mode = #tpu.pipeline_mode<synchronous>, transform_indices = @transform_4, window_bounds = array<i64: 1, 4>}, {pipeline_mode = #tpu.pipeline_mode<synchronous>, transform_indices = @transform_5, window_bounds = array<i64: 3, 4, 8>}, {pipeline_mode = #tpu.pipeline_mode<synchronous>, transform_indices = @transform_6, window_bounds = array<i64: 3, 4, 8>}, {pipeline_mode = #tpu.pipeline_mode<synchronous>, transform_indices = @transform_7, window_bounds = array<i64: 1, 8>}, {pipeline_mode = #tpu.pipeline_mode<synchronous>, transform_indices = @transform_8, window_bounds = array<i64: 1, 8>}, {transform_indices = @transform_9, window_bounds = array<i64: 1, 4, 8>}]} {
    %c0 = arith.constant 0 : index
    %c0_0 = arith.constant 0 : index
    %c0_1 = arith.constant 0 : index
    %0 = vector.load %arg1[%c0, %c0_0, %c0_1] : memref<1x16x4xf32, #tpu.memory_space<vmem>>, vector<1x16x4xf32>
    %1 = vector.shape_cast %0 : vector<1x16x4xf32> to vector<16x4xf32>
    %cst = arith.constant 0.000000e+00 : f32
    %2 = vector.broadcast %cst : f32 to vector<32x4xf32>
    %c0_2 = arith.constant 0 : index
    %c0_3 = arith.constant 0 : index
    %3 = vector.load %arg11[%c0_2, %c0_3] : memref<32x4xf32, #tpu.memory_space<vmem>>, vector<32x4xf32>
    tpu.vector_store %arg11[%c0_2, %c0_3], %2 {strides = array<i32>} : memref<32x4xf32, #tpu.memory_space<vmem>>, vector<32x4xf32>,
    %c8 = arith.constant 8 : index
    %c0_4 = arith.constant 0 : index
    %4 = vector.load %arg11[%c8, %c0_4] : memref<32x4xf32, #tpu.memory_space<vmem>>, vector<16x4xf32>
    tpu.vector_store %arg11[%c8, %c0_4], %1 {strides = array<i32>} : memref<32x4xf32, #tpu.memory_space<vmem>>, vector<16x4xf32>,
    %cst_5 = arith.constant 0.000000e+00 : f32
    %5 = vector.broadcast %cst_5 : f32 to vector<8x4xf32>
    %cst_6 = arith.constant 0.000000e+00 : f32
    %6 = vector.broadcast %cst_6 : f32 to vector<8x4xf32>
    %c7 = arith.constant 7 : index
    %c0_7 = arith.constant 0 : index
    %7 = tpu.strided_load %arg11[%c7, %c0_7] {strides = array<i32: 2, 1>} : memref<32x4xf32, #tpu.memory_space<vmem>>, vector<8x4xf32>
    %c0_8 = arith.constant 0 : index
    %c0_9 = arith.constant 0 : index
    %c0_10 = arith.constant 0 : index
    %8 = vector.load %arg3[%c0_8, %c0_9, %c0_10] : memref<3x4x4xf32, #tpu.memory_space<vmem>>, vector<1x4x4xf32>
    %9 = vector.shape_cast %8 : vector<1x4x4xf32> to vector<4x4xf32>
    %cst_11 = arith.constant dense<0.000000e+00> : vector<8x4xf32>
    %10 = tpu.matmul %7, %9, %cst_11 {dimension_numbers = #tpu.dot_dimension_numbers<[1], [0], [0], [1], [0, 0, 1, 1], [], []>} : vector<8x4xf32>, vector<4x4xf32>, vector<8x4xf32> -> vector<8x4xf32>
    %11 = arith.addf %6, %10 : vector<8x4xf32>
    %c0_12 = arith.constant 0 : index
    %c0_13 = arith.constant 0 : index
    %c0_14 = arith.constant 0 : index
    %12 = vector.load %arg2[%c0_12, %c0_13, %c0_14] : memref<3x4x4xf32, #tpu.memory_space<vmem>>, vector<1x4x4xf32>
    %13 = vector.shape_cast %12 : vector<1x4x4xf32> to vector<4x4xf32>
    %cst_15 = arith.constant dense<0.000000e+00> : vector<8x4xf32>
    %14 = tpu.matmul %7, %13, %cst_15 {dimension_numbers = #tpu.dot_dimension_numbers<[1], [0], [0], [1], [0, 0, 1, 1], [], []>} : vector<8x4xf32>, vector<4x4xf32>, vector<8x4xf32> -> vector<8x4xf32>
    %15 = arith.addf %5, %14 : vector<8x4xf32>
    %c8_16 = arith.constant 8 : index
    %c0_17 = arith.constant 0 : index
    %16 = tpu.strided_load %arg11[%c8_16, %c0_17] {strides = array<i32: 2, 1>} : memref<32x4xf32, #tpu.memory_space<vmem>>, vector<8x4xf32>
    %c1 = arith.constant 1 : index
    %c0_18 = arith.constant 0 : index
    %c0_19 = arith.constant 0 : index
    %17 = vector.load %arg3[%c1, %c0_18, %c0_19] : memref<3x4x4xf32, #tpu.memory_space<vmem>>, vector<1x4x4xf32>
    %18 = vector.shape_cast %17 : vector<1x4x4xf32> to vector<4x4xf32>
    %cst_20 = arith.constant dense<0.000000e+00> : vector<8x4xf32>
    %19 = tpu.matmul %16, %18, %cst_20 {dimension_numbers = #tpu.dot_dimension_numbers<[1], [0], [0], [1], [0, 0, 1, 1], [], []>} : vector<8x4xf32>, vector<4x4xf32>, vector<8x4xf32> -> vector<8x4xf32>
    %20 = arith.addf %11, %19 : vector<8x4xf32>
    %c1_21 = arith.constant 1 : index
    %c0_22 = arith.constant 0 : index
    %c0_23 = arith.constant 0 : index
    %21 = vector.load %arg2[%c1_21, %c0_22, %c0_23] : memref<3x4x4xf32, #tpu.memory_space<vmem>>, vector<1x4x4xf32>
    %22 = vector.shape_cast %21 : vector<1x4x4xf32> to vector<4x4xf32>
    %cst_24 = arith.constant dense<0.000000e+00> : vector<8x4xf32>
    %23 = tpu.matmul %16, %22, %cst_24 {dimension_numbers = #tpu.dot_dimension_numbers<[1], [0], [0], [1], [0, 0, 1, 1], [], []>} : vector<8x4xf32>, vector<4x4xf32>, vector<8x4xf32> -> vector<8x4xf32>
    %24 = arith.addf %15, %23 : vector<8x4xf32>
    %c9 = arith.constant 9 : index
    %c0_25 = arith.constant 0 : index
    %25 = tpu.strided_load %arg11[%c9, %c0_25] {strides = array<i32: 2, 1>} : memref<32x4xf32, #tpu.memory_space<vmem>>, vector<8x4xf32>
    %c2 = arith.constant 2 : index
    %c0_26 = arith.constant 0 : index
    %c0_27 = arith.constant 0 : index
    %26 = vector.load %arg3[%c2, %c0_26, %c0_27] : memref<3x4x4xf32, #tpu.memory_space<vmem>>, vector<1x4x4xf32>
    %27 = vector.shape_cast %26 : vector<1x4x4xf32> to vector<4x4xf32>
    %cst_28 = arith.constant dense<0.000000e+00> : vector<8x4xf32>
    %28 = tpu.matmul %25, %27, %cst_28 {dimension_numbers = #tpu.dot_dimension_numbers<[1], [0], [0], [1], [0, 0, 1, 1], [], []>} : vector<8x4xf32>, vector<4x4xf32>, vector<8x4xf32> -> vector<8x4xf32>
    %29 = arith.addf %20, %28 : vector<8x4xf32>
    %c2_29 = arith.constant 2 : index
    %c0_30 = arith.constant 0 : index
    %c0_31 = arith.constant 0 : index
    %30 = vector.load %arg2[%c2_29, %c0_30, %c0_31] : memref<3x4x4xf32, #tpu.memory_space<vmem>>, vector<1x4x4xf32>
    %31 = vector.shape_cast %30 : vector<1x4x4xf32> to vector<4x4xf32>
    %cst_32 = arith.constant dense<0.000000e+00> : vector<8x4xf32>
    %32 = tpu.matmul %25, %31, %cst_32 {dimension_numbers = #tpu.dot_dimension_numbers<[1], [0], [0], [1], [0, 0, 1, 1], [], []>} : vector<8x4xf32>, vector<4x4xf32>, vector<8x4xf32> -> vector<8x4xf32>
    %33 = arith.addf %24, %32 : vector<8x4xf32>
    %c0_33 = arith.constant 0 : index
    %c0_34 = arith.constant 0 : index
    %34 = vector.load %arg5[%c0_33, %c0_34] : memref<1x4xf32, #tpu.memory_space<vmem>>, vector<1x4xf32>
    %35 = vector.broadcast %34 : vector<1x4xf32> to vector<8x4xf32>
    %36 = arith.addf %29, %35 : vector<8x4xf32>
    %37 = arith.negf %36 : vector<8x4xf32>
    %38 = math.exp %37 : vector<8x4xf32>
    %cst_35 = arith.constant 1.000000e+00 : f32
    %39 = vector.broadcast %cst_35 : f32 to vector<8x4xf32>
    %40 = arith.addf %39, %38 : vector<8x4xf32>
    %41 = arith.divf %39, %40 : vector<8x4xf32>
    %c0_36 = arith.constant 0 : index
    %c0_37 = arith.constant 0 : index
    %42 = vector.load %arg4[%c0_36, %c0_37] : memref<1x4xf32, #tpu.memory_space<vmem>>, vector<1x4xf32>
    %43 = vector.broadcast %42 : vector<1x4xf32> to vector<8x4xf32>
    %44 = arith.addf %33, %43 : vector<8x4xf32>
    %45 = arith.mulf %44, %41 : vector<8x4xf32>
    %cst_38 = arith.constant 0.000000e+00 : f32
    %46 = vector.broadcast %cst_38 : f32 to vector<24x4xf32>
    %c0_39 = arith.constant 0 : index
    %c0_40 = arith.constant 0 : index
    %47 = vector.load %arg12[%c0_39, %c0_40] : memref<24x4xf32, #tpu.memory_space<vmem>>, vector<24x4xf32>
    tpu.vector_store %arg12[%c0_39, %c0_40], %46 {strides = array<i32>} : memref<24x4xf32, #tpu.memory_space<vmem>>, vector<24x4xf32>,
    %c8_41 = arith.constant 8 : index
    %c0_42 = arith.constant 0 : index
    %48 = vector.load %arg12[%c8_41, %c0_42] : memref<24x4xf32, #tpu.memory_space<vmem>>, vector<8x4xf32>
    tpu.vector_store %arg12[%c8_41, %c0_42], %45 {strides = array<i32>} : memref<24x4xf32, #tpu.memory_space<vmem>>, vector<8x4xf32>,
    %cst_43 = arith.constant 0.000000e+00 : f32
    %49 = vector.broadcast %cst_43 : f32 to vector<4x8xf32>
    %cst_44 = arith.constant 0.000000e+00 : f32
    %50 = vector.broadcast %cst_44 : f32 to vector<4x8xf32>
    %c7_45 = arith.constant 7 : index
    %c0_46 = arith.constant 0 : index
    %51 = tpu.strided_load %arg12[%c7_45, %c0_46] {strides = array<i32: 2, 1>} : memref<24x4xf32, #tpu.memory_space<vmem>>, vector<4x4xf32>
    %c0_47 = arith.constant 0 : index
    %c0_48 = arith.constant 0 : index
    %c0_49 = arith.constant 0 : index
    %52 = vector.load %arg7[%c0_47, %c0_48, %c0_49] : memref<3x4x8xf32, #tpu.memory_space<vmem>>, vector<1x4x8xf32>
    %53 = vector.shape_cast %52 : vector<1x4x8xf32> to vector<4x8xf32>
    %cst_50 = arith.constant dense<0.000000e+00> : vector<4x8xf32>
    %54 = tpu.matmul %51, %53, %cst_50 {dimension_numbers = #tpu.dot_dimension_numbers<[1], [0], [0], [1], [0, 0, 1, 1], [], []>} : vector<4x4xf32>, vector<4x8xf32>, vector<4x8xf32> -> vector<4x8xf32>
    %55 = arith.addf %50, %54 : vector<4x8xf32>
    %c0_51 = arith.constant 0 : index
    %c0_52 = arith.constant 0 : index
    %c0_53 = arith.constant 0 : index
    %56 = vector.load %arg6[%c0_51, %c0_52, %c0_53] : memref<3x4x8xf32, #tpu.memory_space<vmem>>, vector<1x4x8xf32>
    %57 = vector.shape_cast %56 : vector<1x4x8xf32> to vector<4x8xf32>
    %cst_54 = arith.constant dense<0.000000e+00> : vector<4x8xf32>
    %58 = tpu.matmul %51, %57, %cst_54 {dimension_numbers = #tpu.dot_dimension_numbers<[1], [0], [0], [1], [0, 0, 1, 1], [], []>} : vector<4x4xf32>, vector<4x8xf32>, vector<4x8xf32> -> vector<4x8xf32>
    %59 = arith.addf %49, %58 : vector<4x8xf32>
    %c8_55 = arith.constant 8 : index
    %c0_56 = arith.constant 0 : index
    %60 = tpu.strided_load %arg12[%c8_55, %c0_56] {strides = array<i32: 2, 1>} : memref<24x4xf32, #tpu.memory_space<vmem>>, vector<4x4xf32>
    %c1_57 = arith.constant 1 : index
    %c0_58 = arith.constant 0 : index
    %c0_59 = arith.constant 0 : index
    %61 = vector.load %arg7[%c1_57, %c0_58, %c0_59] : memref<3x4x8xf32, #tpu.memory_space<vmem>>, vector<1x4x8xf32>
    %62 = vector.shape_cast %61 : vector<1x4x8xf32> to vector<4x8xf32>
    %cst_60 = arith.constant dense<0.000000e+00> : vector<4x8xf32>
    %63 = tpu.matmul %60, %62, %cst_60 {dimension_numbers = #tpu.dot_dimension_numbers<[1], [0], [0], [1], [0, 0, 1, 1], [], []>} : vector<4x4xf32>, vector<4x8xf32>, vector<4x8xf32> -> vector<4x8xf32>
    %64 = arith.addf %55, %63 : vector<4x8xf32>
    %c1_61 = arith.constant 1 : index
    %c0_62 = arith.constant 0 : index
    %c0_63 = arith.constant 0 : index
    %65 = vector.load %arg6[%c1_61, %c0_62, %c0_63] : memref<3x4x8xf32, #tpu.memory_space<vmem>>, vector<1x4x8xf32>
    %66 = vector.shape_cast %65 : vector<1x4x8xf32> to vector<4x8xf32>
    %cst_64 = arith.constant dense<0.000000e+00> : vector<4x8xf32>
    %67 = tpu.matmul %60, %66, %cst_64 {dimension_numbers = #tpu.dot_dimension_numbers<[1], [0], [0], [1], [0, 0, 1, 1], [], []>} : vector<4x4xf32>, vector<4x8xf32>, vector<4x8xf32> -> vector<4x8xf32>
    %68 = arith.addf %59, %67 : vector<4x8xf32>
    %c9_65 = arith.constant 9 : index
    %c0_66 = arith.constant 0 : index
    %69 = tpu.strided_load %arg12[%c9_65, %c0_66] {strides = array<i32: 2, 1>} : memref<24x4xf32, #tpu.memory_space<vmem>>, vector<4x4xf32>
    %c2_67 = arith.constant 2 : index
    %c0_68 = arith.constant 0 : index
    %c0_69 = arith.constant 0 : index
    %70 = vector.load %arg7[%c2_67, %c0_68, %c0_69] : memref<3x4x8xf32, #tpu.memory_space<vmem>>, vector<1x4x8xf32>
    %71 = vector.shape_cast %70 : vector<1x4x8xf32> to vector<4x8xf32>
    %cst_70 = arith.constant dense<0.000000e+00> : vector<4x8xf32>
    %72 = tpu.matmul %69, %71, %cst_70 {dimension_numbers = #tpu.dot_dimension_numbers<[1], [0], [0], [1], [0, 0, 1, 1], [], []>} : vector<4x4xf32>, vector<4x8xf32>, vector<4x8xf32> -> vector<4x8xf32>
    %73 = arith.addf %64, %72 : vector<4x8xf32>
    %c2_71 = arith.constant 2 : index
    %c0_72 = arith.constant 0 : index
    %c0_73 = arith.constant 0 : index
    %74 = vector.load %arg6[%c2_71, %c0_72, %c0_73] : memref<3x4x8xf32, #tpu.memory_space<vmem>>, vector<1x4x8xf32>
    %75 = vector.shape_cast %74 : vector<1x4x8xf32> to vector<4x8xf32>
    %cst_74 = arith.constant dense<0.000000e+00> : vector<4x8xf32>
    %76 = tpu.matmul %69, %75, %cst_74 {dimension_numbers = #tpu.dot_dimension_numbers<[1], [0], [0], [1], [0, 0, 1, 1], [], []>} : vector<4x4xf32>, vector<4x8xf32>, vector<4x8xf32> -> vector<4x8xf32>
    %77 = arith.addf %68, %76 : vector<4x8xf32>
    %c0_75 = arith.constant 0 : index
    %c0_76 = arith.constant 0 : index
    %78 = vector.load %arg9[%c0_75, %c0_76] : memref<1x8xf32, #tpu.memory_space<vmem>>, vector<1x8xf32>
    %79 = vector.broadcast %78 : vector<1x8xf32> to vector<4x8xf32>
    %80 = arith.addf %73, %79 : vector<4x8xf32>
    %81 = arith.negf %80 : vector<4x8xf32>
    %82 = math.exp %81 : vector<4x8xf32>
    %cst_77 = arith.constant 1.000000e+00 : f32
    %83 = vector.broadcast %cst_77 : f32 to vector<4x8xf32>
    %84 = arith.addf %83, %82 : vector<4x8xf32>
    %85 = arith.divf %83, %84 : vector<4x8xf32>
    %c0_78 = arith.constant 0 : index
    %c0_79 = arith.constant 0 : index
    %86 = vector.load %arg8[%c0_78, %c0_79] : memref<1x8xf32, #tpu.memory_space<vmem>>, vector<1x8xf32>
    %87 = vector.broadcast %86 : vector<1x8xf32> to vector<4x8xf32>
    %88 = arith.addf %77, %87 : vector<4x8xf32>
    %89 = arith.mulf %88, %85 : vector<4x8xf32>
    %c0_80 = arith.constant 0 : index
    %c0_81 = arith.constant 0 : index
    %c0_82 = arith.constant 0 : index
    %90 = vector.load %arg10[%c0_80, %c0_81, %c0_82] : memref<1x4x8xf32, #tpu.memory_space<vmem>>, vector<1x4x8xf32>
    %91 = vector.shape_cast %90 : vector<1x4x8xf32> to vector<4x8xf32>
    %92 = vector.shape_cast %89 : vector<4x8xf32> to vector<1x4x8xf32>
    tpu.vector_store %arg10[%c0_80, %c0_81, %c0_82], %92 {strides = array<i32>} : memref<1x4x8xf32, #tpu.memory_space<vmem>>, vector<1x4x8xf32>,
    return
  }
  func.func @transform_0(%arg0: i32) -> (i32, i32, i32) {
    %c0_i32 = arith.constant 0 : i32
    %c0_i32_0 = arith.constant 0 : i32
    %c0_i32_1 = arith.constant 0 : i32
    return %arg0, %c0_i32, %c0_i32_0 : i32, i32, i32
  }
  func.func @transform_1(%arg0: i32) -> (i32, i32, i32) {
    %c0_i32 = arith.constant 0 : i32
    %c0_i32_0 = arith.constant 0 : i32
    %c0_i32_1 = arith.constant 0 : i32
    %c0_i32_2 = arith.constant 0 : i32
    return %c0_i32, %c0_i32_0, %c0_i32_1 : i32, i32, i32
  }
  func.func @transform_2(%arg0: i32) -> (i32, i32, i32) {
    %c0_i32 = arith.constant 0 : i32
    %c0_i32_0 = arith.constant 0 : i32
    %c0_i32_1 = arith.constant 0 : i32
    %c0_i32_2 = arith.constant 0 : i32
    return %c0_i32, %c0_i32_0, %c0_i32_1 : i32, i32, i32
  }
  func.func @transform_3(%arg0: i32) -> (i32, i32) {
    %c0_i32 = arith.constant 0 : i32
    %c0_i32_0 = arith.constant 0 : i32
    %c0_i32_1 = arith.constant 0 : i32
    return %c0_i32, %c0_i32_0 : i32, i32
  }
  func.func @transform_4(%arg0: i32) -> (i32, i32) {
    %c0_i32 = arith.constant 0 : i32
    %c0_i32_0 = arith.constant 0 : i32
    %c0_i32_1 = arith.constant 0 : i32
    return %c0_i32, %c0_i32_0 : i32, i32
  }
  func.func @transform_5(%arg0: i32) -> (i32, i32, i32) {
    %c0_i32 = arith.constant 0 : i32
    %c0_i32_0 = arith.constant 0 : i32
    %c0_i32_1 = arith.constant 0 : i32
    %c0_i32_2 = arith.constant 0 : i32
    return %c0_i32, %c0_i32_0, %c0_i32_1 : i32, i32, i32
  }
  func.func @transform_6(%arg0: i32) -> (i32, i32, i32) {
    %c0_i32 = arith.constant 0 : i32
    %c0_i32_0 = arith.constant 0 : i32
    %c0_i32_1 = arith.constant 0 : i32
    %c0_i32_2 = arith.constant 0 : i32
    return %c0_i32, %c0_i32_0, %c0_i32_1 : i32, i32, i32
  }
  func.func @transform_7(%arg0: i32) -> (i32, i32) {
    %c0_i32 = arith.constant 0 : i32
    %c0_i32_0 = arith.constant 0 : i32
    %c0_i32_1 = arith.constant 0 : i32
    return %c0_i32, %c0_i32_0 : i32, i32
  }
  func.func @transform_8(%arg0: i32) -> (i32, i32) {
    %c0_i32 = arith.constant 0 : i32
    %c0_i32_0 = arith.constant 0 : i32
    %c0_i32_1 = arith.constant 0 : i32
    return %c0_i32, %c0_i32_0 : i32, i32
  }
  func.func @transform_9(%arg0: i32) -> (i32, i32, i32) {
    %c0_i32 = arith.constant 0 : i32
    %c0_i32_0 = arith.constant 0 : i32
    %c0_i32_1 = arith.constant 0 : i32
    return %arg0, %c0_i32, %c0_i32_0 : i32, i32, i32
  }
}

</mosaic_0001>

<llo_original>
// kernel: tpu_custom_call.1
$region0: #{tpu_custom_call.1}
  #allocation0 [shape = 'u32[]', space=smem, size = 0x4, offset = 0x4, fixed_abs, tag = 'smem constant byte address 0x4 - core index']
  #allocation1 [shape = 'u32[72,128]{1,0:T(1,128)}', space=vmem, size = 0x9000, scoped, tag = 'internal scratch']
  #allocation2 [shape = 'f32[32,4]{1,0:T(8,128)}', space=vmem, size = 0x4000, scoped, tag = 'scratch operand']
  #allocation3 [shape = 'f32[24,4]{1,0:T(8,128)}', space=vmem, size = 0x3000, scoped, tag = 'scratch operand']
  %s0 = inlined_call_operand.vmem [shape: f32[2,16,4], index: 0, kind: input, shape index: {}]
  %s1 = inlined_call_operand.vmem [shape: f32[3,4,4], index: 1, kind: input, shape index: {}]
  %s2 = inlined_call_operand.vmem [shape: f32[3,4,4], index: 2, kind: input, shape index: {}]
  %s3 = inlined_call_operand.vmem [shape: f32[1,4], index: 3, kind: input, shape index: {}]
  %s4 = inlined_call_operand.vmem [shape: f32[1,4], index: 4, kind: input, shape index: {}]
  %s5 = inlined_call_operand.vmem [shape: f32[3,4,8], index: 5, kind: input, shape index: {}]
  %s6 = inlined_call_operand.hbm [shape: f32[3,4,8], index: 6, kind: input, shape index: {}]
  %s7 = inlined_call_operand.vmem [shape: f32[1,8], index: 7, kind: input, shape index: {}]
  %s8 = inlined_call_operand.vmem [shape: f32[1,8], index: 8, kind: input, shape index: {}]
  %s9 = inlined_call_operand.hbm [shape: f32[2,4,8], index: 9, kind: output, shape index: {}]
  %s10 = sld [smem:[#allocation0]]
  $region73: #{tpu_custom_call.1} parent=0
    _
  %s12 = ssub.s32 1, %s10
  %s13 = scalar_select 0, %s12, %s10
  $region1: #{tpu_custom_call.1} parent=0
    #allocation4 [shape = 'u8[6144]{0}', space=vmem, size = 0x1800, scoped, tag = 'input window, operand 6, single buffered']
    #allocation5 [shape = 's32[2]{0}', space=sflag, size = 0x8, scoped, tag = 'scoped memory for tpu_custom_call.1']
    #allocation6 [shape = 's32[2]{0}', space=sflag, size = 0x8, scoped, tag = 'scoped memory for tpu_custom_call.1']
    #allocation7 [shape = 'u8[4096]{0}', space=vmem, size = 0x1000, scoped, tag = 'output window, operand 0']
    %14 = vsyncpa [#allocation5], 0
    %15 = vsyncpa [#allocation6], 0
    %s16 = scalar_lea.sflag [#allocation6], 1
    %17 = vsyncpa %s16, 0
    loop: start=0, step=1, limit=4
    $region2: #{tpu_custom_call.1} parent=1 // loop_pre_header
      _
    $region3: #{tpu_custom_call.1} parent=1 // loop_header
      %s19 = sphi 0, %s23
      %p20 = scmp.ge.s32.totalorder %s19, 4
      %s29 = sphi 0, %s31
      %s32 = sphi 0, %s29
      %s33 = sphi 0, %s32
      %s49 = sphi 0, %s33
      %s53 = sphi 0, %s53
      %s55 = sphi 0, %s53
      %s56 = sphi 0, %s55
      %s70 = sphi 0, %s56
      %s74 = sphi 0, %s74
      %s76 = sphi 0, %s74
      %s77 = sphi 0, %s76
      %s91 = sphi 0, %s77
      %s95 = sphi 0, %s95
      %s97 = sphi 0, %s95
      %s98 = sphi 0, %s97
      %s112 = sphi 0, %s98
      %s116 = sphi 0, %s116
      %s118 = sphi 0, %s116
      %s119 = sphi 0, %s118
      %s133 = sphi 0, %s119
      %s137 = sphi 0, %s137
      %s139 = sphi 0, %s137
      %s140 = sphi 0, %s139
      %s154 = sphi 0, %s140
      %s158 = sphi 0, %s158
      %s160 = sphi 0, %s158
      %s161 = sphi 0, %s160
      %s175 = sphi 0, %s161
      %s179 = sphi 0, %s179
      %s181 = sphi 0, %s179
      %s182 = sphi 0, %s181
      %s196 = sphi 0, %s182
      %s200 = sphi 0, %s200
      %s202 = sphi 0, %s200
      %s203 = sphi 0, %s202
      %s217 = sphi 0, %s203
      %s223 = sphi 0, %s225
      %s226 = sphi 0, %s223
      %s227 = sphi 0, %s226
      %s243 = sphi 0, %s227
    $region4: #{tpu_custom_call.1} parent=1 // loop_header_branch
      %22 = sbr.rel (%p20) target = $region8
    $region5: #{tpu_custom_call.1} parent=1 // loop_body
      %s24 = ssub.s32 %s19, 1
      %s25 = ssub.s32 %s19, 2
      %s26 = sadd.s32 %s19, 1
      %s27 = ssub.s32 %s19, %s26
      %p28 = scmp.eq.s32.totalorder %s27, 0
      %s30 = sadd.s32 %s29, 1
      %s31 = scalar_select %p28, %s29, %s30
      %p34 = pneg %p28
      %p35 = scmp.eq.s32.totalorder %s19, 1
      %p36 = por %p34, %p35
      %p37 = scmp.ne.s32.totalorder %s29, %s32
      %p38 = scmp.eq.s32.totalorder %s19, 0
      %p39 = por %p37, %p38
      %p40 = scmp.ne.s32.totalorder %s29, %s32
      %p41 = scmp.eq.s32.totalorder %s24, 1
      %p42 = por %p40, %p41
      %p43 = scmp.ne.s32.totalorder %s32, %s33
      %p44 = scmp.eq.s32.totalorder %s24, 0
      %p45 = por %p43, %p44
      %p46 = scmp.ne.s32.totalorder %s32, %s33
      %p47 = scmp.eq.s32.totalorder %s25, 1
      %p48 = por %p46, %p47
      %p50 = scmp.ne.s32.totalorder %s33, %s49
      %p51 = scmp.eq.s32.totalorder %s25, 0
      %p52 = por %p50, %p51
      %s54 = sadd.s32 %s53, 1
      %p57 = scmp.eq.s32.totalorder %s19, 1
      %p58 = scmp.ne.s32.totalorder %s53, %s55
      %p59 = scmp.eq.s32.totalorder %s19, 0
      %p60 = por %p58, %p59
      %p61 = scmp.ne.s32.totalorder %s53, %s55
      %p62 = scmp.eq.s32.totalorder %s24, 1
      %p63 = por %p61, %p62
      %p64 = scmp.ne.s32.totalorder %s55, %s56
      %p65 = scmp.eq.s32.totalorder %s24, 0
      %p66 = por %p64, %p65
      %p67 = scmp.ne.s32.totalorder %s55, %s56
      %p68 = scmp.eq.s32.totalorder %s25, 1
      %p69 = por %p67, %p68
      %p71 = scmp.ne.s32.totalorder %s56, %s70
      %p72 = scmp.eq.s32.totalorder %s25, 0
      %p73 = por %p71, %p72
      %s75 = sadd.s32 %s74, 1
      %p78 = scmp.eq.s32.totalorder %s19, 1
      %p79 = scmp.ne.s32.totalorder %s74, %s76
      %p80 = scmp.eq.s32.totalorder %s19, 0
      %p81 = por %p79, %p80
      %p82 = scmp.ne.s32.totalorder %s74, %s76
      %p83 = scmp.eq.s32.totalorder %s24, 1
      %p84 = por %p82, %p83
      %p85 = scmp.ne.s32.totalorder %s76, %s77
      %p86 = scmp.eq.s32.totalorder %s24, 0
      %p87 = por %p85, %p86
      %p88 = scmp.ne.s32.totalorder %s76, %s77
      %p89 = scmp.eq.s32.totalorder %s25, 1
      %p90 = por %p88, %p89
      %p92 = scmp.ne.s32.totalorder %s77, %s91
      %p93 = scmp.eq.s32.totalorder %s25, 0
      %p94 = por %p92, %p93
      %s96 = sadd.s32 %s95, 1
      %p99 = scmp.eq.s32.totalorder %s19, 1
      %p100 = scmp.ne.s32.totalorder %s95, %s97
      %p101 = scmp.eq.s32.totalorder %s19, 0
      %p102 = por %p100, %p101
      %p103 = scmp.ne.s32.totalorder %s95, %s97
      %p104 = scmp.eq.s32.totalorder %s24, 1
      %p105 = por %p103, %p104
      %p106 = scmp.ne.s32.totalorder %s97, %s98
      %p107 = scmp.eq.s32.totalorder %s24, 0
      %p108 = por %p106, %p107
      %p109 = scmp.ne.s32.totalorder %s97, %s98
      %p110 = scmp.eq.s32.totalorder %s25, 1
      %p111 = por %p109, %p110
      %p113 = scmp.ne.s32.totalorder %s98, %s112
      %p114 = scmp.eq.s32.totalorder %s25, 0
      %p115 = por %p113, %p114
      %s117 = sadd.s32 %s116, 1
      %p120 = scmp.eq.s32.totalorder %s19, 1
      %p121 = scmp.ne.s32.totalorder %s116, %s118
      %p122 = scmp.eq.s32.totalorder %s19, 0
      %p123 = por %p121, %p122
      %p124 = scmp.ne.s32.totalorder %s116, %s118
      %p125 = scmp.eq.s32.totalorder %s24, 1
      %p126 = por %p124, %p125
      %p127 = scmp.ne.s32.totalorder %s118, %s119
      %p128 = scmp.eq.s32.totalorder %s24, 0
      %p129 = por %p127, %p128
      %p130 = scmp.ne.s32.totalorder %s118, %s119
      %p131 = scmp.eq.s32.totalorder %s25, 1
      %p132 = por %p130, %p131
      %p134 = scmp.ne.s32.totalorder %s119, %s133
      %p135 = scmp.eq.s32.totalorder %s25, 0
      %p136 = por %p134, %p135
      %s138 = sadd.s32 %s137, 1
      %p141 = scmp.eq.s32.totalorder %s19, 1
      %p142 = scmp.ne.s32.totalorder %s137, %s139
      %p143 = scmp.eq.s32.totalorder %s19, 0
      %p144 = por %p142, %p143
      %p145 = scmp.ne.s32.totalorder %s137, %s139
      %p146 = scmp.eq.s32.totalorder %s24, 1
      %p147 = por %p145, %p146
      %p148 = scmp.ne.s32.totalorder %s139, %s140
      %p149 = scmp.eq.s32.totalorder %s24, 0
      %p150 = por %p148, %p149
      %p151 = scmp.ne.s32.totalorder %s139, %s140
      %p152 = scmp.eq.s32.totalorder %s25, 1
      %p153 = por %p151, %p152
      %p155 = scmp.ne.s32.totalorder %s140, %s154
      %p156 = scmp.eq.s32.totalorder %s25, 0
      %p157 = por %p155, %p156
      %s159 = sadd.s32 %s158, 1
      %p162 = scmp.eq.s32.totalorder %s19, 1
      %p163 = scmp.ne.s32.totalorder %s158, %s160
      %p164 = scmp.eq.s32.totalorder %s19, 0
      %p165 = por %p163, %p164
      %p166 = scmp.ne.s32.totalorder %s158, %s160
      %p167 = scmp.eq.s32.totalorder %s24, 1
      %p168 = por %p166, %p167
      %p169 = scmp.ne.s32.totalorder %s160, %s161
      %p170 = scmp.eq.s32.totalorder %s24, 0
      %p171 = por %p169, %p170
      %p172 = scmp.ne.s32.totalorder %s160, %s161
      %p173 = scmp.eq.s32.totalorder %s25, 1
      %p174 = por %p172, %p173
      %p176 = scmp.ne.s32.totalorder %s161, %s175
      %p177 = scmp.eq.s32.totalorder %s25, 0
      %p178 = por %p176, %p177
      %s180 = sadd.s32 %s179, 1
      %p183 = scmp.eq.s32.totalorder %s19, 1
      %p184 = scmp.ne.s32.totalorder %s179, %s181
      %p185 = scmp.eq.s32.totalorder %s19, 0
      %p186 = por %p184, %p185
      %p187 = scmp.ne.s32.totalorder %s179, %s181
      %p188 = scmp.eq.s32.totalorder %s24, 1
      %p189 = por %p187, %p188
      %p190 = scmp.ne.s32.totalorder %s181, %s182
      %p191 = scmp.eq.s32.totalorder %s24, 0
      %p192 = por %p190, %p191
      %p193 = scmp.ne.s32.totalorder %s181, %s182
      %p194 = scmp.eq.s32.totalorder %s25, 1
      %p195 = por %p193, %p194
      %p197 = scmp.ne.s32.totalorder %s182, %s196
      %p198 = scmp.eq.s32.totalorder %s25, 0
      %p199 = por %p197, %p198
      %s201 = sadd.s32 %s200, 1
      %p204 = scmp.eq.s32.totalorder %s19, 1
      %p205 = scmp.ne.s32.totalorder %s200, %s202
      %p206 = scmp.eq.s32.totalorder %s19, 0
      %p207 = por %p205, %p206
      %p208 = scmp.ne.s32.totalorder %s200, %s202
      %p209 = scmp.eq.s32.totalorder %s24, 1
      %p210 = por %p208, %p209
      %p211 = scmp.ne.s32.totalorder %s202, %s203
      %p212 = scmp.eq.s32.totalorder %s24, 0
      %p213 = por %p211, %p212
      %p214 = scmp.ne.s32.totalorder %s202, %s203
      %p215 = scmp.eq.s32.totalorder %s25, 1
      %p216 = por %p214, %p215
      %p218 = scmp.ne.s32.totalorder %s203, %s217
      %p219 = scmp.eq.s32.totalorder %s25, 0
      %p220 = por %p218, %p219
      %s221 = ssub.s32 %s19, %s26
      %p222 = scmp.eq.s32.totalorder %s221, 0
      %s224 = sadd.s32 %s223, 1
      %s225 = scalar_select %p222, %s223, %s224
      %p228 = pneg %p222
      %p229 = scmp.eq.s32.totalorder %s19, 1
      %p230 = por %p228, %p229
      %p231 = scmp.ne.s32.totalorder %s223, %s226
      %p232 = scmp.eq.s32.totalorder %s19, 0
      %p233 = por %p231, %p232
      %p234 = scmp.ne.s32.totalorder %s223, %s226
      %p235 = scmp.eq.s32.totalorder %s24, 1
      %p236 = por %p234, %p235
      %p237 = scmp.ne.s32.totalorder %s226, %s227
      %p238 = scmp.eq.s32.totalorder %s24, 0
      %p239 = por %p237, %p238
      %p240 = scmp.ne.s32.totalorder %s226, %s227
      %p241 = scmp.eq.s32.totalorder %s25, 1
      %p242 = por %p240, %p241
      %p244 = scmp.ne.s32.totalorder %s227, %s243
      %p245 = scmp.eq.s32.totalorder %s25, 0
      %p246 = por %p244, %p245
      %p247 = scmp.le.s32.totalorder 1, %s19
      %p248 = scmp.lt.s32.totalorder %s19, 3
      %p249 = pnand %p247, %p248
      %p250 = pneg %p249
      // Predicated region
      $region9: #{tpu_custom_call.1} parent=5 // pred_check
        _
      $region10: #{tpu_custom_call.1} parent=5 // pred_check_branch
        %252 = sbr.rel (%p249) target = $region12
      $region11: #{tpu_custom_call.1} parent=5 // pred_region
        %s253 = ssub.s32 %s19, 1
        // Predicated region
        $region13: #{tpu_custom_call.1} parent=11 // pred_check
          %p254 = pneg %p66
        $region14: #{tpu_custom_call.1} parent=11 // pred_check_branch
          %256 = sbr.rel (%p254) target = $region16
        $region15: #{tpu_custom_call.1} parent=11 // pred_region
          _
        $region16: #{tpu_custom_call.1} parent=11 // pred_fallthru
          _
        // Predicated region
        $region17: #{tpu_custom_call.1} parent=11 // pred_check
          %p257 = pneg %p87
        $region18: #{tpu_custom_call.1} parent=11 // pred_check_branch
          %259 = sbr.rel (%p257) target = $region20
        $region19: #{tpu_custom_call.1} parent=11 // pred_region
          _
        $region20: #{tpu_custom_call.1} parent=11 // pred_fallthru
          _
        // Predicated region
        $region21: #{tpu_custom_call.1} parent=11 // pred_check
          %p260 = pneg %p108
        $region22: #{tpu_custom_call.1} parent=11 // pred_check_branch
          %262 = sbr.rel (%p260) target = $region24
        $region23: #{tpu_custom_call.1} parent=11 // pred_region
          _
        $region24: #{tpu_custom_call.1} parent=11 // pred_fallthru
          _
        // Predicated region
        $region25: #{tpu_custom_call.1} parent=11 // pred_check
          %p263 = pneg %p129
        $region26: #{tpu_custom_call.1} parent=11 // pred_check_branch
          %265 = sbr.rel (%p263) target = $region28
        $region27: #{tpu_custom_call.1} parent=11 // pred_region
          _
        $region28: #{tpu_custom_call.1} parent=11 // pred_fallthru
          _
        // Predicated region
        $region29: #{tpu_custom_call.1} parent=11 // pred_check
          %p266 = pneg %p150
        $region30: #{tpu_custom_call.1} parent=11 // pred_check_branch
          %268 = sbr.rel (%p266) target = $region32
        $region31: #{tpu_custom_call.1} parent=11 // pred_region
          _
        $region32: #{tpu_custom_call.1} parent=11 // pred_fallthru
          _
        // Predicated region
        $region33: #{tpu_custom_call.1} parent=11 // pred_check
          %p269 = pneg %p171
        $region34: #{tpu_custom_call.1} parent=11 // pred_check_branch
          %271 = sbr.rel (%p269) target = $region36
        $region35: #{tpu_custom_call.1} parent=11 // pred_region
          %273 = vsyncadd [#allocation5], 0
          %s274 = sshll.u32 %s6, 4
          %s275 = int_to_ptr.hbm [resolvable:$true] %s274
          %s276 = sshll.u32 [#allocation4], 4
          %s277 = int_to_ptr.vmem [resolvable:$true] %s276
          %282 = dma.hbm_to_vmem [thread:$0]  %s275, 192, %s277, [#allocation5], 64, 64, 4
        $region36: #{tpu_custom_call.1} parent=11 // pred_fallthru
          _
        // Predicated region
        $region37: #{tpu_custom_call.1} parent=11 // pred_check
          %p283 = pneg %p192
        $region38: #{tpu_custom_call.1} parent=11 // pred_check_branch
          %285 = sbr.rel (%p283) target = $region40
        $region39: #{tpu_custom_call.1} parent=11 // pred_region
          _
        $region40: #{tpu_custom_call.1} parent=11 // pred_fallthru
          _
        // Predicated region
        $region41: #{tpu_custom_call.1} parent=11 // pred_check
          %p286 = pneg %p213
        $region42: #{tpu_custom_call.1} parent=11 // pred_check_branch
          %288 = sbr.rel (%p286) target = $region44
        $region43: #{tpu_custom_call.1} parent=11 // pred_region
          _
        $region44: #{tpu_custom_call.1} parent=11 // pred_fallthru
          _
      $region12: #{tpu_custom_call.1} parent=5 // pred_fallthru
        _
      %p289 = scmp.lt.s32.totalorder %s19, 2
      // Predicated region
      $region45: #{tpu_custom_call.1} parent=5 // pred_check
        %p290 = pneg %p289
      $region46: #{tpu_custom_call.1} parent=5 // pred_check_branch
        %292 = sbr.rel (%p290) target = $region48
      $region47: #{tpu_custom_call.1} parent=5 // pred_region
        // Predicated region
        $region49: #{tpu_custom_call.1} parent=47 // pred_check
          %p293 = pneg %p39
        $region50: #{tpu_custom_call.1} parent=47 // pred_check_branch
          %295 = sbr.rel (%p293) target = $region52
        $region51: #{tpu_custom_call.1} parent=47 // pred_region
          %p296 = scmp.lt.s32.totalorder %s19, 1
          %s297 = scalar_select %p296, %s19, 1
          %s298 = smul.addr %s297, 2
          %s299 = smul.addr %s298, 8
          %s300 = scalar_lea.vmem %s0, %s299
        $region52: #{tpu_custom_call.1} parent=47 // pred_fallthru
          _
      $region48: #{tpu_custom_call.1} parent=5 // pred_fallthru
        _
      %p301 = scmp.le.s32.totalorder 1, %s19
      %p302 = scmp.lt.s32.totalorder %s19, 3
      %p303 = pnand %p301, %p302
      %p304 = pneg %p303
      // Predicated region
      $region53: #{tpu_custom_call.1} parent=5 // pred_check
        _
      $region54: #{tpu_custom_call.1} parent=5 // pred_check_branch
        %306 = sbr.rel (%p303) target = $region56
      $region55: #{tpu_custom_call.1} parent=5 // pred_region
        %s307 = ssub.s32 %s19, 1
        // Predicated region
        $region57: #{tpu_custom_call.1} parent=55 // pred_check
          %p308 = pneg %p171
        $region58: #{tpu_custom_call.1} parent=55 // pred_check_branch
          %310 = sbr.rel (%p308) target = $region60
        $region59: #{tpu_custom_call.1} parent=55 // pred_region
          %312 = dma.done [#allocation5], 192
        $region60: #{tpu_custom_call.1} parent=55 // pred_fallthru
          _
        %p313 = scmp.lt.s32.totalorder %s24, 1
        %s314 = scalar_select %p313, %s24, 1
        %s315 = smul.addr %s314, 2
        %s316 = smul.addr %s315, 8
        %s317 = scalar_lea.vmem %s0, %s316
        %p318 = pneg %p45
        %p319 = pneg %p42
        %p320 = pneg %p66
        %p321 = pneg %p63
        %p322 = pneg %p87
        %p323 = pneg %p84
        %p324 = pneg %p108
        %p325 = pneg %p105
        %p326 = pneg %p129
        %p327 = pneg %p126
        %p328 = pneg %p150
        %p329 = pneg %p147
        %p330 = pneg %p171
        %p331 = pneg %p168
        %p332 = pneg %p192
        %p333 = pneg %p189
        %p334 = pneg %p213
        %p335 = pneg %p210
        %p336 = pneg %p239
        %p337 = pneg %p236
        %s338 = sand.u32 %s226, 1
        %s339 = scalar_lea.sflag [#allocation6], %s338
        %s340 = sand.u32 %s226, 1
        %s341 = smul.addr %s340, 4
        %s342 = scalar_lea.vmem [#allocation7], %s341
        %p343 = scmp.lt.s32.totalorder %s24, 1
        %s344 = scalar_select %p343, %s24, 1
        %s345 = smul.addr %s344, 2
        %s346 = smul.addr %s345, 8
        %s347 = scalar_lea.vmem %s0, %s346
        %v348 = vld [vmem:[%s347] sm:$0xff]
        %v349 = vld [vmem:[%s347 + $0x8] sm:$0xff]
        %vm350 = vcmask 31744
        %351 = vst.msk [vmem:[#allocation2] sm:$0xff] %vm350, 0.0
        %352 = vst.msk [vmem:[#allocation2 + $0x8] sm:$0xff] %vm350, 0.0
        %353 = vst.msk [vmem:[#allocation2 + $0x10] sm:$0xff] %vm350, 0.0
        %354 = vst.msk [vmem:[#allocation2 + $0x18] sm:$0xff] %vm350, 0.0
        %355 = vst.msk [vmem:[#allocation2 + $0x8] sm:$0xff] %vm350, %v348
        %356 = vst.msk [vmem:[#allocation2 + $0x10] sm:$0xff] %vm350, %v349
        %s357 = scalar_lea.vmem [#allocation2], 7
        %v358 = vld [vmem:[%s357] ss:$2 sm:$0xff]
        %v359 = vld [vmem:[%s2] sm:$0xf]
        %v360 = vld [vmem:[%s1] sm:$0xf]
        %s361 = scalar_lea.vmem [#allocation2], 8
        %v362 = vld [vmem:[%s361] ss:$2 sm:$0xff]
        %s363 = scalar_lea.vmem %s2, 4
        %v364 = vld [vmem:[%s363] sm:$0xf]
        %v366 = vsel %vm350, %v362, 0
        %vm368 = vcmask 1043456
        %v370 = vsel %vm368, %v364, 0
        %372 = vmatpush.msra.mxu0 0.0
        %373 = vmatpush.msra.mxu0 0.0
        %374 = vmatpush.msra.mxu0 0.0
        %375 = vmatpush.msra.mxu0 0.0
        %376 = vmatpush.msra.mxu0 0.0
        %377 = vmatpush.msra.mxu0 0.0
        %378 = vmatpush.msra.mxu0 0.0
        %379 = vmatpush.msra.mxu0 0.0
        %380 = vmatpush.msra.mxu0 0.0
        %381 = vmatpush.msra.mxu0 0.0
        %382 = vmatpush.msra.mxu0 0.0
        %383 = vmatpush.msra.mxu0 0.0
        %384 = vmatpush.msra.mxu0 0.0
        %385 = vmatpush.msra.mxu0 0.0
        %386 = vmatpush.msra.mxu0 0.0
        %387 = vmatpush.msra.mxu0 %v370
        %388 = vmatmul.f32.gmra.mxu0 %v366
        %v389 = vpop.f32.mrf.mxu0
        %v390 = vadd.f32 0.0, %v389
        %391 = vdwg.mxu0
        %v393 = vsel %vm350, %v358, 0
        %v396 = vsel %vm368, %v359, 0
        %398 = vmatpush.msra.mxu0 0.0
        %399 = vmatpush.msra.mxu0 0.0
        %400 = vmatpush.msra.mxu0 0.0
        %401 = vmatpush.msra.mxu0 0.0
        %402 = vmatpush.msra.mxu0 0.0
        %403 = vmatpush.msra.mxu0 0.0
        %404 = vmatpush.msra.mxu0 0.0
        %405 = vmatpush.msra.mxu0 0.0
        %406 = vmatpush.msra.mxu0 0.0
        %407 = vmatpush.msra.mxu0 0.0
        %408 = vmatpush.msra.mxu0 0.0
        %409 = vmatpush.msra.mxu0 0.0
        %410 = vmatpush.msra.mxu0 0.0
        %411 = vmatpush.msra.mxu0 0.0
        %412 = vmatpush.msra.mxu0 0.0
        %413 = vmatpush.msra.mxu0 %v396
        %414 = vmatmul.f32.gmra.mxu0 %v393
        %v415 = vpop.f32.mrf.mxu0
        %v416 = vadd.f32 %v390, %v415
        %417 = vdwg.mxu0
        %s418 = scalar_lea.vmem %s1, 4
        %v419 = vld [vmem:[%s418] sm:$0xf]
        %v421 = vsel %vm368, %v419, 0
        %423 = vmatpush.msra.mxu0 0.0
        %424 = vmatpush.msra.mxu0 0.0
        %425 = vmatpush.msra.mxu0 0.0
        %426 = vmatpush.msra.mxu0 0.0
        %427 = vmatpush.msra.mxu0 0.0
        %428 = vmatpush.msra.mxu0 0.0
        %429 = vmatpush.msra.mxu0 0.0
        %430 = vmatpush.msra.mxu0 0.0
        %431 = vmatpush.msra.mxu0 0.0
        %432 = vmatpush.msra.mxu0 0.0
        %433 = vmatpush.msra.mxu0 0.0
        %434 = vmatpush.msra.mxu0 0.0
        %435 = vmatpush.msra.mxu0 0.0
        %436 = vmatpush.msra.mxu0 0.0
        %437 = vmatpush.msra.mxu0 0.0
        %438 = vmatpush.msra.mxu0 %v421
        %439 = vmatmul.f32.gmra.mxu0 %v366
        %v440 = vpop.f32.mrf.mxu0
        %v441 = vadd.f32 0.0, %v440
        %442 = vdwg.mxu0
        %v444 = vsel %vm368, %v360, 0
        %446 = vmatpush.msra.mxu0 0.0
        %447 = vmatpush.msra.mxu0 0.0
        %448 = vmatpush.msra.mxu0 0.0
        %449 = vmatpush.msra.mxu0 0.0
        %450 = vmatpush.msra.mxu0 0.0
        %451 = vmatpush.msra.mxu0 0.0
        %452 = vmatpush.msra.mxu0 0.0
        %453 = vmatpush.msra.mxu0 0.0
        %454 = vmatpush.msra.mxu0 0.0
        %455 = vmatpush.msra.mxu0 0.0
        %456 = vmatpush.msra.mxu0 0.0
        %457 = vmatpush.msra.mxu0 0.0
        %458 = vmatpush.msra.mxu0 0.0
        %459 = vmatpush.msra.mxu0 0.0
        %460 = vmatpush.msra.mxu0 0.0
        %461 = vmatpush.msra.mxu0 %v444
        %462 = vmatmul.f32.gmra.mxu0 %v393
        %v463 = vpop.f32.mrf.mxu0
        %v464 = vadd.f32 %v441, %v463
        %465 = vdwg.mxu0
        %s466 = scalar_lea.vmem [#allocation2], 9
        %v467 = vld [vmem:[%s466] ss:$2 sm:$0xff]
        %s468 = scalar_lea.vmem %s2, 8
        %v469 = vld [vmem:[%s468] sm:$0xf]
        %v471 = vsel %vm350, %v467, 0
        %v474 = vsel %vm368, %v469, 0
        %476 = vmatpush.msra.mxu0 0.0
        %477 = vmatpush.msra.mxu0 0.0
        %478 = vmatpush.msra.mxu0 0.0
        %479 = vmatpush.msra.mxu0 0.0
        %480 = vmatpush.msra.mxu0 0.0
        %481 = vmatpush.msra.mxu0 0.0
        %482 = vmatpush.msra.mxu0 0.0
        %483 = vmatpush.msra.mxu0 0.0
        %484 = vmatpush.msra.mxu0 0.0
        %485 = vmatpush.msra.mxu0 0.0
        %486 = vmatpush.msra.mxu0 0.0
        %487 = vmatpush.msra.mxu0 0.0
        %488 = vmatpush.msra.mxu0 0.0
        %489 = vmatpush.msra.mxu0 0.0
        %490 = vmatpush.msra.mxu0 0.0
        %491 = vmatpush.msra.mxu0 %v474
        %492 = vmatmul.f32.gmra.mxu0 %v471
        %v493 = vpop.f32.mrf.mxu0
        %v494 = vadd.f32 0.0, %v493
        %495 = vdwg.mxu0
        %v496 = vadd.f32 %v416, %v494
        %s497 = scalar_lea.vmem %s1, 8
        %v498 = vld [vmem:[%s497] sm:$0xf]
        %v500 = vsel %vm368, %v498, 0
        %502 = vmatpush.msra.mxu0 0.0
        %503 = vmatpush.msra.mxu0 0.0
        %504 = vmatpush.msra.mxu0 0.0
        %505 = vmatpush.msra.mxu0 0.0
        %506 = vmatpush.msra.mxu0 0.0
        %507 = vmatpush.msra.mxu0 0.0
        %508 = vmatpush.msra.mxu0 0.0
        %509 = vmatpush.msra.mxu0 0.0
        %510 = vmatpush.msra.mxu0 0.0
        %511 = vmatpush.msra.mxu0 0.0
        %512 = vmatpush.msra.mxu0 0.0
        %513 = vmatpush.msra.mxu0 0.0
        %514 = vmatpush.msra.mxu0 0.0
        %515 = vmatpush.msra.mxu0 0.0
        %516 = vmatpush.msra.mxu0 0.0
        %517 = vmatpush.msra.mxu0 %v500
        %518 = vmatmul.f32.gmra.mxu0 %v471
        %v519 = vpop.f32.mrf.mxu0
        %v520 = vadd.f32 0.0, %v519
        %521 = vdwg.mxu0
        %v522 = vadd.f32 %v464, %v520
        %v523 = vld [vmem:[%s4] sm:$0x1]
        %v525 = vperm.slane %v523, 0
        %v527 = vadd.f32 %v496, %v525
        %v528 = vxor.u32 %v527, 2147483648
        %v529 = vmul.f32 %v528, 1.442695
        %v530 = vpow.pop %v529
        %v531 = vadd.f32 %v530, 1.0
        %v532 = vrcp.pop %v531
        %v533 = vmul.f32 %v531, %v532
        %v534 = vsub.f32 1.0, %v533
        %v535 = vmul.f32 %v532, %v534
        %v536 = vadd.f32 %v532, %v535
        %vm537 = vweird.f32 %v531
        %vm538 = vweird.f32 %v532
        %vm539 = vmor %vm537, %vm538
        %v540 = vsel %vm539, %v532, %v536
        %v541 = vand.u32 2147483647, %v531
        %vm542 = vcmp.eq.f32.partialorder %v541, 8.507059e+37
        %v543 = vand.u32 %v531, 2147483648
        %v544 = vor.u32 1.1754944e-38, %v543
        %v545 = vsel %vm542, %v544, %v540
        %v546 = vmul.f32 1.0, %v545
        %v547 = vld [vmem:[%s3] sm:$0x1]
        %v549 = vperm.slane %v547, 0
        %v551 = vadd.f32 %v522, %v549
        %v552 = vmul.f32 %v551, %v546
        %553 = vst.msk [vmem:[#allocation3] sm:$0xff] %vm350, 0.0
        %554 = vst.msk [vmem:[#allocation3 + $0x8] sm:$0xff] %vm350, 0.0
        %555 = vst.msk [vmem:[#allocation3 + $0x10] sm:$0xff] %vm350, 0.0
        %556 = vst.msk [vmem:[#allocation3 + $0x8] sm:$0xff] %vm350, %v552
        %s557 = scalar_lea.vmem [#allocation3], 7
        %v558 = vld [vmem:[%s557] ss:$2 sm:$0xf]
        %v559 = vld [vmem:[#allocation4] sm:$0xf]
        %v560 = vld [vmem:[%s5] sm:$0xf]
        %s561 = scalar_lea.vmem [#allocation3], 8
        %v562 = vld [vmem:[%s561] ss:$2 sm:$0xf]
        %s563 = scalar_lea.vmem [#allocation4], 4
        %v564 = vld [vmem:[%s563] sm:$0xf]
        %v566 = vsel %vm350, %v562, 0
        %v569 = vsel %vm368, %v564, 0
        %571 = vmatpush.msra.mxu0 0.0
        %572 = vmatpush.msra.mxu0 0.0
        %573 = vmatpush.msra.mxu0 0.0
        %574 = vmatpush.msra.mxu0 0.0
        %575 = vmatpush.msra.mxu0 0.0
        %576 = vmatpush.msra.mxu0 0.0
        %577 = vmatpush.msra.mxu0 0.0
        %578 = vmatpush.msra.mxu0 0.0
        %579 = vmatpush.msra.mxu0 0.0
        %580 = vmatpush.msra.mxu0 0.0
        %581 = vmatpush.msra.mxu0 0.0
        %582 = vmatpush.msra.mxu0 0.0
        %583 = vmatpush.msra.mxu0 0.0
        %584 = vmatpush.msra.mxu0 0.0
        %585 = vmatpush.msra.mxu0 0.0
        %586 = vmatpush.msra.mxu0 %v569
        %587 = vmatmul.f32.gmra.mxu0 %v566
        %v588 = vpop.f32.mrf.mxu0
        %v589 = vadd.f32 0.0, %v588
        %590 = vdwg.mxu0
        %v592 = vsel %vm350, %v558, 0
        %v595 = vsel %vm368, %v559, 0
        %597 = vmatpush.msra.mxu0 0.0
        %598 = vmatpush.msra.mxu0 0.0
        %599 = vmatpush.msra.mxu0 0.0
        %600 = vmatpush.msra.mxu0 0.0
        %601 = vmatpush.msra.mxu0 0.0
        %602 = vmatpush.msra.mxu0 0.0
        %603 = vmatpush.msra.mxu0 0.0
        %604 = vmatpush.msra.mxu0 0.0
        %605 = vmatpush.msra.mxu0 0.0
        %606 = vmatpush.msra.mxu0 0.0
        %607 = vmatpush.msra.mxu0 0.0
        %608 = vmatpush.msra.mxu0 0.0
        %609 = vmatpush.msra.mxu0 0.0
        %610 = vmatpush.msra.mxu0 0.0
        %611 = vmatpush.msra.mxu0 0.0
        %612 = vmatpush.msra.mxu0 %v595
        %613 = vmatmul.f32.gmra.mxu0 %v592
        %v614 = vpop.f32.mrf.mxu0
        %v615 = vadd.f32 %v589, %v614
        %616 = vdwg.mxu0
        %s617 = scalar_lea.vmem %s5, 4
        %v618 = vld [vmem:[%s617] sm:$0xf]
        %v620 = vsel %vm368, %v618, 0
        %622 = vmatpush.msra.mxu0 0.0
        %623 = vmatpush.msra.mxu0 0.0
        %624 = vmatpush.msra.mxu0 0.0
        %625 = vmatpush.msra.mxu0 0.0
        %626 = vmatpush.msra.mxu0 0.0
        %627 = vmatpush.msra.mxu0 0.0
        %628 = vmatpush.msra.mxu0 0.0
        %629 = vmatpush.msra.mxu0 0.0
        %630 = vmatpush.msra.mxu0 0.0
        %631 = vmatpush.msra.mxu0 0.0
        %632 = vmatpush.msra.mxu0 0.0
        %633 = vmatpush.msra.mxu0 0.0
        %634 = vmatpush.msra.mxu0 0.0
        %635 = vmatpush.msra.mxu0 0.0
        %636 = vmatpush.msra.mxu0 0.0
        %637 = vmatpush.msra.mxu0 %v620
        %638 = vmatmul.f32.gmra.mxu0 %v566
        %v639 = vpop.f32.mrf.mxu0
        %v640 = vadd.f32 0.0, %v639
        %641 = vdwg.mxu0
        %v643 = vsel %vm368, %v560, 0
        %645 = vmatpush.msra.mxu0 0.0
        %646 = vmatpush.msra.mxu0 0.0
        %647 = vmatpush.msra.mxu0 0.0
        %648 = vmatpush.msra.mxu0 0.0
        %649 = vmatpush.msra.mxu0 0.0
        %650 = vmatpush.msra.mxu0 0.0
        %651 = vmatpush.msra.mxu0 0.0
        %652 = vmatpush.msra.mxu0 0.0
        %653 = vmatpush.msra.mxu0 0.0
        %654 = vmatpush.msra.mxu0 0.0
        %655 = vmatpush.msra.mxu0 0.0
        %656 = vmatpush.msra.mxu0 0.0
        %657 = vmatpush.msra.mxu0 0.0
        %658 = vmatpush.msra.mxu0 0.0
        %659 = vmatpush.msra.mxu0 0.0
        %660 = vmatpush.msra.mxu0 %v643
        %661 = vmatmul.f32.gmra.mxu0 %v592
        %v662 = vpop.f32.mrf.mxu0
        %v663 = vadd.f32 %v640, %v662
        %664 = vdwg.mxu0
        %s665 = scalar_lea.vmem [#allocation3], 9
        %v666 = vld [vmem:[%s665] ss:$2 sm:$0xf]
        %s667 = scalar_lea.vmem [#allocation4], 8
        %v668 = vld [vmem:[%s667] sm:$0xf]
        %v670 = vsel %vm350, %v666, 0
        %v673 = vsel %vm368, %v668, 0
        %675 = vmatpush.msra.mxu0 0.0
        %676 = vmatpush.msra.mxu0 0.0
        %677 = vmatpush.msra.mxu0 0.0
        %678 = vmatpush.msra.mxu0 0.0
        %679 = vmatpush.msra.mxu0 0.0
        %680 = vmatpush.msra.mxu0 0.0
        %681 = vmatpush.msra.mxu0 0.0
        %682 = vmatpush.msra.mxu0 0.0
        %683 = vmatpush.msra.mxu0 0.0
        %684 = vmatpush.msra.mxu0 0.0
        %685 = vmatpush.msra.mxu0 0.0
        %686 = vmatpush.msra.mxu0 0.0
        %687 = vmatpush.msra.mxu0 0.0
        %688 = vmatpush.msra.mxu0 0.0
        %689 = vmatpush.msra.mxu0 0.0
        %690 = vmatpush.msra.mxu0 %v673
        %691 = vmatmul.f32.gmra.mxu0 %v670
        %v692 = vpop.f32.mrf.mxu0
        %v693 = vadd.f32 0.0, %v692
        %694 = vdwg.mxu0
        %v695 = vadd.f32 %v615, %v693
        %s696 = scalar_lea.vmem %s5, 8
        %v697 = vld [vmem:[%s696] sm:$0xf]
        %v699 = vsel %vm368, %v697, 0
        %701 = vmatpush.msra.mxu0 0.0
        %702 = vmatpush.msra.mxu0 0.0
        %703 = vmatpush.msra.mxu0 0.0
        %704 = vmatpush.msra.mxu0 0.0
        %705 = vmatpush.msra.mxu0 0.0
        %706 = vmatpush.msra.mxu0 0.0
        %707 = vmatpush.msra.mxu0 0.0
        %708 = vmatpush.msra.mxu0 0.0
        %709 = vmatpush.msra.mxu0 0.0
        %710 = vmatpush.msra.mxu0 0.0
        %711 = vmatpush.msra.mxu0 0.0
        %712 = vmatpush.msra.mxu0 0.0
        %713 = vmatpush.msra.mxu0 0.0
        %714 = vmatpush.msra.mxu0 0.0
        %715 = vmatpush.msra.mxu0 0.0
        %716 = vmatpush.msra.mxu0 %v699
        %717 = vmatmul.f32.gmra.mxu0 %v670
        %v718 = vpop.f32.mrf.mxu0
        %v719 = vadd.f32 0.0, %v718
        %720 = vdwg.mxu0
        %v721 = vadd.f32 %v663, %v719
        %v722 = vld [vmem:[%s8] sm:$0x1]
        %v724 = vperm.slane %v722, 0
        %v726 = vadd.f32 %v695, %v724
        %v727 = vxor.u32 %v726, 2147483648
        %v728 = vmul.f32 %v727, 1.442695
        %v729 = vpow.pop %v728
        %v730 = vadd.f32 %v729, 1.0
        %v731 = vrcp.pop %v730
        %v732 = vmul.f32 %v730, %v731
        %v733 = vsub.f32 1.0, %v732
        %v734 = vmul.f32 %v731, %v733
        %v735 = vadd.f32 %v731, %v734
        %vm736 = vweird.f32 %v730
        %vm737 = vweird.f32 %v731
        %vm738 = vmor %vm736, %vm737
        %v739 = vsel %vm738, %v731, %v735
        %v740 = vand.u32 2147483647, %v730
        %vm741 = vcmp.eq.f32.partialorder %v740, 8.507059e+37
        %v742 = vand.u32 %v730, 2147483648
        %v743 = vor.u32 1.1754944e-38, %v742
        %v744 = vsel %vm741, %v743, %v739
        %v745 = vmul.f32 1.0, %v744
        %v746 = vld [vmem:[%s7] sm:$0x1]
        %v748 = vperm.slane %v746, 0
        %v750 = vadd.f32 %v721, %v748
        %v751 = vmul.f32 %v750, %v745
        %vm752 = vcmask 60416
        %753 = vst.msk [vmem:[%s342] sm:$0xf] %vm752, %v751
        %s754 = sand.u32 %s226, 1
        %s755 = scalar_lea.sflag [#allocation6], %s754
        %s756 = sand.u32 %s226, 1
        %s757 = smul.addr %s756, 4
        %s758 = scalar_lea.vmem [#allocation7], %s757
        // Predicated region
        $region61: #{tpu_custom_call.1} parent=55 // pred_check
          %p759 = pneg %p236
        $region62: #{tpu_custom_call.1} parent=55 // pred_check_branch
          %761 = sbr.rel (%p759) target = $region64
        $region63: #{tpu_custom_call.1} parent=55 // pred_region
          %763 = vsyncadd %s755, 0
          %s764 = smul.addr %s24, 4
          %s765 = scalar_lea.hbm %s9, %s764
          %s767 = sshll.u32 %s758, 4
          %s768 = int_to_ptr.vmem [resolvable:$true] %s767
          %s769 = sshll.u32 %s765, 4
          %s770 = int_to_ptr.hbm [resolvable:$true] %s769
          %772 = dma.vmem_to_hbm [thread:$0]  %s768, 64, %s770, %s755
        $region64: #{tpu_custom_call.1} parent=55 // pred_fallthru
          _
      $region56: #{tpu_custom_call.1} parent=5 // pred_fallthru
        _
      %p773 = scmp.le.s32.totalorder 2, %s19
      // Predicated region
      $region65: #{tpu_custom_call.1} parent=5 // pred_check
        %p774 = pneg %p773
      $region66: #{tpu_custom_call.1} parent=5 // pred_check_branch
        %776 = sbr.rel (%p774) target = $region68
      $region67: #{tpu_custom_call.1} parent=5 // pred_region
        %s777 = ssub.s32 %s19, 2
        // Predicated region
        $region69: #{tpu_custom_call.1} parent=67 // pred_check
          %p778 = pneg %p242
        $region70: #{tpu_custom_call.1} parent=67 // pred_check_branch
          %780 = sbr.rel (%p778) target = $region72
        $region71: #{tpu_custom_call.1} parent=67 // pred_region
          %s781 = sand.u32 %s227, 1
          %s782 = scalar_lea.sflag [#allocation6], %s781
          %s783 = sand.u32 %s227, 1
          %s784 = smul.addr %s783, 4
          %s785 = scalar_lea.vmem [#allocation7], %s784
          %787 = dma.done %s782, 64
        $region72: #{tpu_custom_call.1} parent=67 // pred_fallthru
          _
      $region68: #{tpu_custom_call.1} parent=5 // pred_fallthru
        _
    $region6: #{tpu_custom_call.1} parent=1 // loop_footer
      %s23 = sadd.s32 1, %s19
    $region7: #{tpu_custom_call.1} parent=1 // loop_footer_branch
      %18 = sbr.rel target = $region3
    $region8: #{tpu_custom_call.1} parent=1 // loop_exit
      _
    %788 = vsyncpa [#allocation5], 1
    %s789 = scalar_lea.sflag [#allocation5], 1
    %790 = vsyncpa %s789, 1
    %791 = vsyncpa [#allocation6], 1
    %s792 = scalar_lea.sflag [#allocation6], 1
    %793 = vsyncpa %s792, 1

</llo_original>
